<compile_context>
chip_gen: v7x
topology: tpu7x:2x2x1
jax: 0.10.0
libtpu: 0.0.40
codegen_flags: <defaults>
</compile_context>

<pallas_src>
import functools

import numpy as np
import jax
import jax.numpy as jnp
from jax.experimental import pallas as pl
from jax.experimental.pallas import tpu as pltpu


def _istft_kernel(spec_ref, w_ref, inv_ref, o_ref, *, ratio, batch, lane_shifts):
    # spec_ref : (2F, B*Wn)        stacked real/imag spectrogram; column b*Wn + t
    #                              holds frame t of batch b (zeros for t >= T).
    # w_ref    : (ratio, Mpad, 2F) per-shift windowed inverse-rDFT basis rows
    #                              (rows >= hop are zero padding).
    # inv_ref  : (Mpad, Wn)        reciprocal of the window^2 OLA envelope
    #                              (shared by all batches).
    # o_ref    : (Mpad, B*Wn)      normalized overlap-added signal; sample
    #                              r*hop + j of batch b lives at [j, b*Wn + r].
    spec = spec_ref[...]
    acc = jnp.dot(w_ref[0], spec, preferred_element_type=jnp.float32)
    for c in range(1, ratio):
        part = jnp.dot(w_ref[c], spec, preferred_element_type=jnp.float32)
        # Shift frame-t contributions to output row r = t + c (lane rotation on
        # the XLU).  Wrap-around only pulls in zero-padded lane columns.
        acc = acc + pltpu.roll(part, shift=lane_shifts[c], axis=1)
    inv = inv_ref[...]
    if batch > 1:
        # Per-batch replication of the envelope; 256-lane boundary is
        # lane-tile aligned so this is a plain vreg copy.
        inv = jnp.concatenate([inv] * batch, axis=1)
    o_ref[...] = acc * inv


def _roll_probe_kernel(x_ref, o_ref):
    o_ref[...] = pltpu.roll(x_ref[...], shift=1, axis=1)


def _roll_is_forward():
    """Determine pltpu.roll direction once at init (robust to convention)."""
    x = jnp.broadcast_to(jnp.arange(128, dtype=jnp.float32)[None, :], (8, 128))
    y = pl.pallas_call(
        _roll_probe_kernel,
        out_shape=jax.ShapeDtypeStruct((8, 128), jnp.float32),
        in_specs=[pl.BlockSpec(memory_space=pltpu.MemorySpace.VMEM)],
        out_specs=pl.BlockSpec(memory_space=pltpu.MemorySpace.VMEM),
    )(x)
    y = np.asarray(jax.block_until_ready(y))
    if y[0, 1] == 0.0:      # result[i] = x[i - shift]  (jnp.roll semantics)
        return True
    if y[0, 0] == 1.0:      # result[i] = x[i + shift]
        return False
    raise RuntimeError("unexpected pltpu.roll semantics")


class ISTFT:
    """JAX/Pallas port of the PyTorch ISTFT module (output length hard-coded to 600)."""

    def __init__(self, n_fft, hop_length, win_length):
        assert win_length == n_fft
        assert n_fft % hop_length == 0
        self.n_fft = int(n_fft)
        self.hop_length = int(hop_length)
        self.win_length = int(win_length)
        self.length = 600

        # torch.hann_window default: periodic=True
        n = np.arange(win_length, dtype=np.float64)
        self.window = (0.5 - 0.5 * np.cos(2.0 * np.pi * n / win_length)).astype(np.float32)

        # Windowed onesided inverse-rDFT basis (irfft, norm="backward"; imaginary
        # parts of DC/Nyquist bins contribute nothing, matching torch):
        #   basisT[n, k]     : contribution of Re X[k] to windowed frame sample n
        #   basisT[n, F + k] : contribution of Im X[k] to windowed frame sample n
        # Refolded per overlap-add shift c: W3[c, j, :] = basisT[c*hop + j, :].
        F = n_fft // 2 + 1
        hop = self.hop_length
        ratio = n_fft // hop
        Mpad = -(-hop // 8) * 8
        k = np.arange(F, dtype=np.float64)[None, :]
        nn = np.arange(n_fft, dtype=np.float64)[:, None]
        ang = 2.0 * np.pi * nn * k / n_fft
        ck = np.where((k == 0) | (k == n_fft // 2), 1.0, 2.0)
        wcol = self.window.astype(np.float64)[:, None]
        basisT = np.concatenate(
            [ck * np.cos(ang) / n_fft * wcol, -ck * np.sin(ang) / n_fft * wcol],
            axis=1)                                                # (n_fft, 2F)
        W3 = np.zeros((ratio, Mpad, 2 * F), dtype=np.float32)
        W3[:, :hop, :] = basisT.reshape(ratio, hop, 2 * F).astype(np.float32)

        self._F = F
        self._ratio = ratio
        self._Mpad = Mpad
        self._w_dev = jnp.asarray(W3)          # constant basis, hoisted to init
        self._inv_cache = {}                   # T -> (Mpad, Wn) device array
        self._roll_forward = _roll_is_forward()

    # ---- host precompute of the OLA envelope reciprocal, cached per T ----
    def _inv_envelope(self, T):
        dev = self._inv_cache.get(T)
        if dev is not None:
            return dev
        n_fft, hop, ratio = self.n_fft, self.hop_length, self._ratio
        n_rows = T + ratio - 1
        L_full = n_rows * hop
        Wn = -(-n_rows // 128) * 128
        start = n_fft // 2
        end = min(start + self.length, L_full)
        env = np.zeros(L_full, dtype=np.float64)
        wsq = self.window.astype(np.float64) ** 2
        for t in range(T):
            env[t * hop:t * hop + n_fft] += wsq
        if np.any(env[start:end] <= 1e-11):
            # mirrors torch.istft's NOLA check for samples that survive the trim
            raise ValueError("ISTFT: window overlap-add is ~zero inside the output range")
        inv = np.where(env > 1e-11, 1.0 / np.where(env > 1e-11, env, 1.0), 1.0)
        inv2d = inv.reshape(n_rows, hop).T               # sample r*hop + j -> [j, r]
        inv_pad = np.ones((self._Mpad, Wn), dtype=np.float32)
        inv_pad[:hop, :n_rows] = inv2d
        dev = jnp.asarray(inv_pad)
        self._inv_cache[T] = dev
        return dev

    def __call__(self, x):
        B, C, F, T, D = x.shape
        assert C == 1 and D == 2 and F == self._F
        hop, ratio, Mpad = self.hop_length, self._ratio, self._Mpad
        n_rows = T + ratio - 1                 # rows of `hop` samples in the OLA signal
        Wn = -(-n_rows // 128) * 128           # lane-padded row count (unmasked stores)
        assert Wn - T >= ratio - 1             # roll wrap only brings in zero columns
        start = self.n_fft // 2                # center=True trim
        assert start + self.length <= Wn * hop

        inv_dev = self._inv_envelope(T)

        # Positive lane shifts for each overlap-add offset, respecting the
        # measured pltpu.roll direction.
        total = B * Wn
        lane_shifts = tuple(
            (c if self._roll_forward else (total - c)) % total for c in range(ratio))

        # ---- layout plumbing (tiny, fused by XLA): (B,1,F,T,2) -> (2F, B*Wn) ----
        spec = jnp.transpose(x[:, 0].astype(jnp.float32), (3, 1, 0, 2))   # (2,F,B,T)
        spec = spec.reshape(2 * F, B, T)
        spec = jnp.pad(spec, ((0, 0), (0, 0), (0, Wn - T))).reshape(2 * F, B * Wn)

        out = pl.pallas_call(
            functools.partial(_istft_kernel, ratio=ratio, batch=B,
                              lane_shifts=lane_shifts),
            out_shape=jax.ShapeDtypeStruct((Mpad, B * Wn), jnp.float32),
            in_specs=[
                pl.BlockSpec(memory_space=pltpu.MemorySpace.VMEM),  # spec
                pl.BlockSpec(memory_space=pltpu.MemorySpace.VMEM),  # basis
                pl.BlockSpec(memory_space=pltpu.MemorySpace.VMEM),  # 1/envelope
            ],
            out_specs=pl.BlockSpec(memory_space=pltpu.MemorySpace.VMEM),
        )(spec, self._w_dev, inv_dev)

        # ---- center=True trim + length handling (glue, plain JAX) ----
        # sample r*hop + j of batch b sits at out[j, b*Wn + r]; lanes beyond the
        # signal are exact zeros, so a single slice handles trim + length.
        y = jnp.transpose(out[:hop].reshape(hop, B, Wn), (1, 2, 0)).reshape(B, Wn * hop)
        y = y[:, start:start + self.length]
        return y[:, None, :]                                         # (B, 1, length)


def _istft_ref(x, n_fft, hop, window, length):
    """Pure JAX/numpy reference (explicit Hermitian ifft + overlap-add)."""
    B, C, F, T, D = x.shape
    spec = x[:, 0, :, :, 0] + 1j * x[:, 0, :, :, 1]              # (B, F, T)
    specT = jnp.transpose(spec, (0, 2, 1))                        # (B, T, F)
    full = jnp.concatenate([specT, jnp.conj(specT[:, :, -2:0:-1])], axis=-1)
    frames = np.asarray(jnp.fft.ifft(full, axis=-1).real)         # (B, T, n_fft)
    w = np.asarray(window, dtype=np.float64)
    frames = frames * w[None, None, :]
    L_full = n_fft + hop * (T - 1)
    y = np.zeros((B, L_full), np.float64)
    env = np.zeros((L_full,), np.float64)
    for t in range(T):
        y[:, t * hop:t * hop + n_fft] += frames[:, t]
        env[t * hop:t * hop + n_fft] += w ** 2
    start = n_fft // 2
    y = y[:, start:start + length] / env[start:start + length]
    return y[:, None, :]


if __name__ == "__main__":
    n_fft, hop, win = 16, 4, 16
    B, C, D = 2, 1, 2
    F = n_fft // 2 + 1          # 9
    T = 151                     # (T - 1) * hop == 600 == requested output length

    key = jax.random.PRNGKey(0)
    x = jax.random.normal(key, (B, C, F, T, D), dtype=jnp.float32)

    model = ISTFT(n_fft, hop, win)
    fwd = jax.jit(model.__call__)
    out = jax.block_until_ready(fwd(x))
    assert out.shape == (B, 1, 600), out.shape

    ref = _istft_ref(x, n_fft, hop, model.window, 600)
    err = float(np.max(np.abs(np.asarray(out) - ref)))
    assert err < 2e-3, f"max abs error {err}"
    print("KERNEL_OK")
</pallas_src>

<mosaic_0001>
module attributes {stable_mosaic.version = 11 : i64} {
  func.func @_roll_probe_kernel(%arg0: memref<8x128xf32, #tpu.memory_space<vmem>>, %arg1: memref<8x128xf32, #tpu.memory_space<vmem>>) attributes {dimension_semantics = [], scalar_prefetch = 0 : i64, scratch_operands = 0 : i64, tpu.core_type = #tpu.core_type<tc>} {
    %c0 = arith.constant 0 : index
    %c0_0 = arith.constant 0 : index
    %0 = vector.load %arg0[%c0, %c0_0] : memref<8x128xf32, #tpu.memory_space<vmem>>, vector<8x128xf32>
    %c1_i32 = arith.constant 1 : i32
    %1 = tpu.dynamic_rotate %0 by %c1_i32 dim 1 : vector<8x128xf32>, i32 -> vector<8x128xf32>
    %c0_1 = arith.constant 0 : index
    %c0_2 = arith.constant 0 : index
    %2 = vector.load %arg1[%c0_1, %c0_2] : memref<8x128xf32, #tpu.memory_space<vmem>>, vector<8x128xf32>
    tpu.vector_store %arg1[%c0_1, %c0_2], %1 {strides = array<i32>} : memref<8x128xf32, #tpu.memory_space<vmem>>, vector<8x128xf32>,
    return
  }
}

</mosaic_0001>

<llo_original>
// kernel: tpu_custom_call.1
$region0: #{tpu_custom_call.1}
  #allocation0 [shape = 'u32[]', space=smem, size = 0x4, offset = 0x4, fixed_abs, tag = 'smem constant byte address 0x4 - core index']
  #allocation1 [shape = 'u32[144,128]{1,0:T(1,128)}', space=vmem, size = 0x12000, scoped, tag = 'internal scratch']
  %s0 = inlined_call_operand.hbm [shape: f32[8,128], index: 0, kind: input, shape index: {}]
  %s1 = inlined_call_operand.hbm [shape: f32[8,128], index: 1, kind: output, shape index: {}]
  %s2 = sld [smem:[#allocation0]]
  $region18: #{tpu_custom_call.1} parent=0
    _
  %s4 = ssub.s32 1, %s2
  %s5 = scalar_select 0, %s4, %s2
  $region1: #{tpu_custom_call.1} parent=0
    #allocation2 [shape = 'u8[4096]{0}', space=vmem, size = 0x1000, scoped, tag = 'input window, operand 0, single buffered']
    #allocation3 [shape = 's32[1]{0}', space=sflag, size = 0x4, scoped, tag = 'scoped memory for tpu_custom_call.1']
    #allocation4 [shape = 's32[1]{0}', space=sflag, size = 0x4, scoped, tag = 'scoped memory for tpu_custom_call.1']
    #allocation5 [shape = 'u8[4096]{0}', space=vmem, size = 0x1000, scoped, tag = 'output window, operand 0, single buffered']
    %6 = vsyncpa [#allocation3], 0
    %7 = vsyncpa [#allocation4], 0
    // Predicated region
    $region2: #{tpu_custom_call.1} parent=1 // pred_check
      _
    $region3: #{tpu_custom_call.1} parent=1 // pred_check_branch
      %9 = sbr.rel (0) target = $region5
    $region4: #{tpu_custom_call.1} parent=1 // pred_region
      %s11 = ssub.s32 128, 128
      %12 = vsyncadd [#allocation3], %s11
      %s14 = sshll.u32 [#allocation2], 4
      %s15 = int_to_ptr.vmem [resolvable:$true] %s14
      %17 = dma.hbm_to_vmem [thread:$0]  %s0, 128, %s15, [#allocation3]
    $region5: #{tpu_custom_call.1} parent=1 // pred_fallthru
      _
    // Predicated region
    $region6: #{tpu_custom_call.1} parent=1 // pred_check
      _
    $region7: #{tpu_custom_call.1} parent=1 // pred_check_branch
      %19 = sbr.rel (0) target = $region9
    $region8: #{tpu_custom_call.1} parent=1 // pred_region
      %20 = dma.done [#allocation3], 128
    $region9: #{tpu_custom_call.1} parent=1 // pred_fallthru
      _
    %v21 = vld [vmem:[#allocation2] sm:$0xff]
    %22 = vrot.lane.b32.xlu0 %v21, 1
    %v23 = vpop.permute.xlu0 %22
    %24 = vst [vmem:[#allocation5] sm:$0xff] %v23
    // Predicated region
    $region10: #{tpu_custom_call.1} parent=1 // pred_check
      _
    $region11: #{tpu_custom_call.1} parent=1 // pred_check_branch
      %26 = sbr.rel (0) target = $region13
    $region12: #{tpu_custom_call.1} parent=1 // pred_region
      %s28 = ssub.s32 128, 128
      %29 = vsyncadd [#allocation4], %s28
      %s31 = sshll.u32 [#allocation5], 4
      %s32 = int_to_ptr.vmem [resolvable:$true] %s31
      %34 = dma.vmem_to_hbm [thread:$0]  %s32, 128, %s1, [#allocation4]
    $region13: #{tpu_custom_call.1} parent=1 // pred_fallthru
      _
    // Predicated region
    $region14: #{tpu_custom_call.1} parent=1 // pred_check
      _
    $region15: #{tpu_custom_call.1} parent=1 // pred_check_branch
      %36 = sbr.rel (0) target = $region17
    $region16: #{tpu_custom_call.1} parent=1 // pred_region
      %37 = dma.done [#allocation4], 128
    $region17: #{tpu_custom_call.1} parent=1 // pred_fallthru
      _
    %38 = vsyncpa [#allocation3], 1
    %39 = vsyncpa [#allocation4], 1

</llo_original>
